<compile_context>
chip_gen: v6e
topology: v6e:2x2x1
jax: 0.10.0
libtpu: 0.0.40
codegen_flags: <defaults>
</compile_context>

<pallas_src>
import functools

import jax
import jax.numpy as jnp
from jax.experimental import pallas as pl
from jax.experimental.pallas import tpu as pltpu


def _round_up(x, m):
    return ((x + m - 1) // m) * m


def _kl_kernel(mu_ref, lv_ref, o_ref, acc_ref, *, scale, rows_total, tr, rbps,
               mask_tail, use_acc):
    """One (tr, C) tile. grid = (split [parallel], row-block [arbitrary])."""
    # Upcast per tile (native-dtype inputs stream from HBM; cast is free on VPU).
    mu = mu_ref[...].astype(jnp.float32)
    lv = lv_ref[...].astype(jnp.float32)

    if mask_tail:
        # Tail block extends past the last row: zero the invalid rows' inputs
        # so their KL term is exactly 1 + 0 - 0 - exp(0) = 0.
        row0 = (pl.program_id(0) * rbps + pl.program_id(1)) * tr
        ridx = row0 + jax.lax.broadcasted_iota(jnp.int32, mu.shape, 0)
        valid = ridx < rows_total
        mu = jnp.where(valid, mu, 0.0)
        lv = jnp.where(valid, lv, 0.0)

    # exp() goes to the EUP slot, the rest is VPU work; all hidden under DMA.
    term = (1.0 + lv) - mu * mu - jnp.exp(lv)

    if use_acc:
        j = pl.program_id(1)

        @pl.when(j == 0)
        def _():
            acc_ref[...] = jnp.zeros_like(acc_ref)

        # Lane-parallel partial sums (reduce over the sublane/row axis only);
        # avoids a full cross-lane reduce + scalar RMW on every grid step.
        acc_ref[...] += jnp.sum(term, axis=0, keepdims=True)

        @pl.when(j == pl.num_programs(1) - 1)
        def _():
            total = jnp.sum(acc_ref[...])        # one cross-lane reduce per split
            o_ref[...] = jnp.full(o_ref.shape, scale * total, jnp.float32)
    else:
        # Single-block grid: no resident accumulator needed.
        o_ref[...] = jnp.full(o_ref.shape, scale * jnp.sum(term), jnp.float32)


def _choose_cols(n):
    """Largest lane-dense column count that makes the reshape a free view."""
    for c in (512, 256, 128):                    # prefer sublane-aligned row counts
        if n % c == 0 and (n // c) % 8 == 0:
            return c
    for c in (512, 256, 128):
        if n % c == 0:
            return c
    return None


def kloss_forward(mu, logvar):
    """-0.5 * mean(1 + logvar - mu^2 - exp(logvar)); matches KLoss.forward."""
    assert mu.shape == logvar.shape, (mu.shape, logvar.shape)
    n = int(mu.size)
    assert n > 0
    itemsize = jnp.dtype(mu.dtype).itemsize

    mu_f = mu.reshape(-1)
    lv_f = logvar.reshape(-1)

    # ---- lane-dense 2-D view (reshape only; no HBM copy in the common case) --
    cols = _choose_cols(n)
    if cols is not None:
        R, C = n // cols, cols
    elif n <= (1 << 20):
        R, C = 1, n                              # single full-extent block
    else:
        # TODO(synk): huge inputs whose element count is not a multiple of 128
        # take a one-time tail pad (extra copy); zero padding contributes 0.
        pad = _round_up(n, 4096) - n
        mu_f = jnp.pad(mu_f, (0, pad))
        lv_f = jnp.pad(lv_f, (0, pad))
        C = 512
        R = (n + pad) // C

    mu2 = mu_f.reshape(R, C)
    lv2 = lv_f.reshape(R, C)

    # ---- row tiling -----------------------------------------------------------
    # Target ~4 MiB per input buffer (16 MiB total double-buffered), tr % 16 == 0.
    cap = max(512, (((4 << 20) // (C * itemsize)) // 16) * 16)
    if R <= 512:
        tr = R                                   # full-extent block: always legal
    else:
        tr = min(cap, _round_up(pl.cdiv(R, 4), 16))
    nblocks = pl.cdiv(R, tr)
    if nblocks > 1 and nblocks % 2 == 1:
        # Nudge toward an even block count so both v7x TensorCores get work.
        tr2 = min(cap, _round_up(pl.cdiv(R, nblocks + 1), 16))
        if pl.cdiv(R, tr2) % 2 == 0:
            tr = tr2
            nblocks = pl.cdiv(R, tr)
    mask_tail = (R % tr) != 0
    use_acc = nblocks > 1
    nsplit = 2 if (nblocks >= 2 and nblocks % 2 == 0) else 1
    rbps = nblocks // nsplit                     # row-blocks per split

    acc_cols = C if use_acc else 128
    kernel = functools.partial(
        _kl_kernel, scale=-0.5 / n, rows_total=R, tr=tr, rbps=rbps,
        mask_tail=mask_tail, use_acc=use_acc)

    out = pl.pallas_call(
        kernel,
        out_shape=jax.ShapeDtypeStruct((nsplit, 8, 128), jnp.float32),
        grid_spec=pltpu.PrefetchScalarGridSpec(
            num_scalar_prefetch=0,
            grid=(nsplit, rbps),
            in_specs=[
                pl.BlockSpec((tr, C), lambda i, j: (i * rbps + j, 0)),
                pl.BlockSpec((tr, C), lambda i, j: (i * rbps + j, 0)),
            ],
            out_specs=pl.BlockSpec((1, 8, 128), lambda i, j: (i, 0, 0)),
            scratch_shapes=[pltpu.VMEM((1, acc_cols), jnp.float32)],
        ),
        compiler_params=pltpu.CompilerParams(
            # Split axis may run on separate TensorCores; the row-block axis is a
            # reduction with a resident accumulator -> must stay "arbitrary".
            dimension_semantics=("parallel", "arbitrary"),
            vmem_limit_bytes=32 << 20,
        ),
        cost_estimate=pl.CostEstimate(
            flops=6 * n,
            transcendentals=n,
            bytes_accessed=2 * n * itemsize + nsplit * 8 * 128 * 4,
        ),
    )(mu2, lv2)

    # Per-split partials (each split's (1, 8, 128) slab is filled with its value).
    return jnp.sum(out[:, 0, 0])


def _reference(mu, logvar):
    mu = mu.astype(jnp.float32)
    logvar = logvar.astype(jnp.float32)
    return -0.5 * jnp.mean(1.0 + logvar - jnp.square(mu) - jnp.exp(logvar))


if __name__ == "__main__":
    key = jax.random.PRNGKey(0)

    # Primary case: (batch, channels, H, W)-style latents; hits the copy-free
    # single-block path.
    k0, k1, k2, k3 = jax.random.split(key, 4)
    shape = (2, 4, 16, 16)
    mu = jax.random.normal(k0, shape, dtype=jnp.float32)
    logvar = 0.5 * jax.random.normal(k1, shape, dtype=jnp.float32)

    out = jax.block_until_ready(kloss_forward(mu, logvar))
    ref = _reference(mu, logvar)
    assert out.shape == (), out.shape
    assert jnp.allclose(out, ref, rtol=1e-4, atol=1e-5), float(jnp.abs(out - ref))

    # Secondary case: exercises the multi-block accumulator, dual-core split and
    # in-kernel tail-row masking paths.
    shape2 = (4, 8, 64, 65)
    mu2 = jax.random.normal(k2, shape2, dtype=jnp.float32)
    logvar2 = 0.5 * jax.random.normal(k3, shape2, dtype=jnp.float32)

    out2 = jax.block_until_ready(kloss_forward(mu2, logvar2))
    ref2 = _reference(mu2, logvar2)
    assert out2.shape == (), out2.shape
    assert jnp.allclose(out2, ref2, rtol=1e-4, atol=1e-5), float(jnp.abs(out2 - ref2))

    print("KERNEL_OK")
</pallas_src>

<mosaic_0001>
module attributes {stable_mosaic.version = 11 : i64} {
  func.func @_kl_kernel(%arg0: i32, %arg1: i32, %arg2: memref<8x256xf32, #tpu.memory_space<vmem>>, %arg3: memref<8x256xf32, #tpu.memory_space<vmem>>, %arg4: memref<1x8x128xf32, #tpu.memory_space<vmem>>, %arg5: memref<1x128xf32, #tpu.memory_space<vmem>>) attributes {dimension_semantics = [#tpu.dimension_semantics<parallel>, #tpu.dimension_semantics<arbitrary>], iteration_bounds = array<i64: 1, 1>, scalar_prefetch = 0 : i64, scratch_operands = 1 : i64, tpu.core_type = #tpu.core_type<tc>, window_params = [{transform_indices = @transform_0, window_bounds = array<i64: 8, 256>}, {transform_indices = @transform_1, window_bounds = array<i64: 8, 256>}, {transform_indices = @transform_2, window_bounds = array<i64: 1, 8, 128>}]} {
    %c0 = arith.constant 0 : index
    %c0_0 = arith.constant 0 : index
    %0 = vector.load %arg2[%c0, %c0_0] : memref<8x256xf32, #tpu.memory_space<vmem>>, vector<8x256xf32>
    %c0_1 = arith.constant 0 : index
    %c0_2 = arith.constant 0 : index
    %1 = vector.load %arg3[%c0_1, %c0_2] : memref<8x256xf32, #tpu.memory_space<vmem>>, vector<8x256xf32>
    %cst = arith.constant 1.000000e+00 : f32
    %2 = vector.broadcast %cst : f32 to vector<8x256xf32>
    %3 = arith.addf %2, %1 : vector<8x256xf32>
    %4 = arith.mulf %0, %0 : vector<8x256xf32>
    %5 = arith.subf %3, %4 : vector<8x256xf32>
    %6 = math.exp %1 : vector<8x256xf32>
    %7 = arith.subf %5, %6 : vector<8x256xf32>
    %8 = vector.shape_cast %7 : vector<8x256xf32> to vector<1x8x256xf32>
    %cst_3 = arith.constant dense<0.000000e+00> : vector<1xf32>
    %9 = vector.multi_reduction <add>, %8, %cst_3 [1, 2] : vector<1x8x256xf32> to vector<1xf32>
    %10 = vector.shape_cast %9 : vector<1xf32> to vector<1x1x1xf32>
    %11 = vector.extract %10[0, 0, 0] : f32 from vector<1x1x1xf32>
    %cst_4 = arith.constant -2.44140625E-4 : f32
    %12 = arith.mulf %cst_4, %11 : f32
    %13 = vector.broadcast %12 : f32 to vector<1x8x128xf32>
    %c0_5 = arith.constant 0 : index
    %c0_6 = arith.constant 0 : index
    %c0_7 = arith.constant 0 : index
    %14 = vector.load %arg4[%c0_5, %c0_6, %c0_7] : memref<1x8x128xf32, #tpu.memory_space<vmem>>, vector<1x8x128xf32>
    tpu.vector_store %arg4[%c0_5, %c0_6, %c0_7], %13 {strides = array<i32>} : memref<1x8x128xf32, #tpu.memory_space<vmem>>, vector<1x8x128xf32>,
    return
  }
  func.func @transform_0(%arg0: i32, %arg1: i32) -> (i32, i32) {
    %c1_i32 = arith.constant 1 : i32
    %0 = arith.muli %arg0, %c1_i32 : i32
    %1 = arith.addi %0, %arg1 : i32
    %c0_i32 = arith.constant 0 : i32
    %c0_i32_0 = arith.constant 0 : i32
    return %1, %c0_i32 : i32, i32
  }
  func.func @transform_1(%arg0: i32, %arg1: i32) -> (i32, i32) {
    %c1_i32 = arith.constant 1 : i32
    %0 = arith.muli %arg0, %c1_i32 : i32
    %1 = arith.addi %0, %arg1 : i32
    %c0_i32 = arith.constant 0 : i32
    %c0_i32_0 = arith.constant 0 : i32
    return %1, %c0_i32 : i32, i32
  }
  func.func @transform_2(%arg0: i32, %arg1: i32) -> (i32, i32, i32) {
    %c0_i32 = arith.constant 0 : i32
    %c0_i32_0 = arith.constant 0 : i32
    %c0_i32_1 = arith.constant 0 : i32
    return %arg0, %c0_i32, %c0_i32_0 : i32, i32, i32
  }
}

</mosaic_0001>

<llo_original>
// kernel: tpu_custom_call.1
$region0: #{tpu_custom_call.1}
  #allocation0 [shape = 'u32[]', space=smem, size = 0x4, offset = 0x4, fixed_abs, tag = 'smem constant byte address 0x4 - core index']
  #allocation1 [shape = 'u32[144,128]{1,0:T(1,128)}', space=vmem, size = 0x12000, scoped, tag = 'internal scratch']
  #allocation2 [shape = 'f32[1,128]{1,0:T(1,128)}', space=vmem, size = 0x200, scoped, tag = 'scratch operand']
  %s0 = inlined_call_operand.hbm [shape: f32[8,256], index: 0, kind: input, shape index: {}]
  %s1 = inlined_call_operand.hbm [shape: f32[8,256], index: 1, kind: input, shape index: {}]
  %s2 = inlined_call_operand.hbm [shape: f32[1,8,128], index: 2, kind: output, shape index: {}]
  %s3 = sld [smem:[#allocation0]]
  $region26: #{tpu_custom_call.1} parent=0
    _
  %s5 = ssub.s32 1, %s3
  %s6 = scalar_select 0, %s5, %s3
  $region1: #{tpu_custom_call.1} parent=0
    #allocation3 [shape = 'u8[8192]{0}', space=vmem, size = 0x2000, scoped, tag = 'input window, operand 0, single buffered']
    #allocation4 [shape = 's32[1]{0}', space=sflag, size = 0x4, scoped, tag = 'scoped memory for tpu_custom_call.1']
    #allocation5 [shape = 's32[1]{0}', space=sflag, size = 0x4, scoped, tag = 'scoped memory for tpu_custom_call.1']
    #allocation6 [shape = 'u8[8192]{0}', space=vmem, size = 0x2000, scoped, tag = 'input window, operand 1, single buffered']
    #allocation7 [shape = 's32[1]{0}', space=sflag, size = 0x4, scoped, tag = 'scoped memory for tpu_custom_call.1']
    #allocation8 [shape = 'u8[4096]{0}', space=vmem, size = 0x1000, scoped, tag = 'output window, operand 0, single buffered']
    %7 = vsyncpa [#allocation4], 0
    %8 = vsyncpa [#allocation7], 0
    %9 = vsyncpa [#allocation5], 0
    // Predicated region
    $region2: #{tpu_custom_call.1} parent=1 // pred_check
      _
    $region3: #{tpu_custom_call.1} parent=1 // pred_check_branch
      %11 = sbr.rel (0) target = $region5
    $region4: #{tpu_custom_call.1} parent=1 // pred_region
      %s12 = sadd.s32 0, 0
      %s14 = ssub.s32 256, 256
      %15 = vsyncadd [#allocation4], %s14
      %s16 = smul.addr %s12, 2
      %s17 = smul.addr %s16, 128
      %s18 = scalar_lea.hbm %s0, %s17
      %s20 = sshll.u32 [#allocation3], 4
      %s21 = int_to_ptr.vmem [resolvable:$true] %s20
      %23 = dma.hbm_to_vmem [thread:$0]  %s18, 256, %s21, [#allocation4]
    $region5: #{tpu_custom_call.1} parent=1 // pred_fallthru
      _
    // Predicated region
    $region6: #{tpu_custom_call.1} parent=1 // pred_check
      _
    $region7: #{tpu_custom_call.1} parent=1 // pred_check_branch
      %25 = sbr.rel (0) target = $region9
    $region8: #{tpu_custom_call.1} parent=1 // pred_region
      %s26 = sadd.s32 0, 0
      %s28 = ssub.s32 256, 256
      %29 = vsyncadd [#allocation7], %s28
      %s30 = smul.addr %s26, 2
      %s31 = smul.addr %s30, 128
      %s32 = scalar_lea.hbm %s1, %s31
      %s34 = sshll.u32 [#allocation6], 4
      %s35 = int_to_ptr.vmem [resolvable:$true] %s34
      %37 = dma.hbm_to_vmem [thread:$0]  %s32, 256, %s35, [#allocation7]
    $region9: #{tpu_custom_call.1} parent=1 // pred_fallthru
      _
    // Predicated region
    $region10: #{tpu_custom_call.1} parent=1 // pred_check
      _
    $region11: #{tpu_custom_call.1} parent=1 // pred_check_branch
      %39 = sbr.rel (0) target = $region13
    $region12: #{tpu_custom_call.1} parent=1 // pred_region
      %40 = dma.done [#allocation4], 256
    $region13: #{tpu_custom_call.1} parent=1 // pred_fallthru
      _
    // Predicated region
    $region14: #{tpu_custom_call.1} parent=1 // pred_check
      _
    $region15: #{tpu_custom_call.1} parent=1 // pred_check_branch
      %42 = sbr.rel (0) target = $region17
    $region16: #{tpu_custom_call.1} parent=1 // pred_region
      %43 = dma.done [#allocation7], 256
    $region17: #{tpu_custom_call.1} parent=1 // pred_fallthru
      _
    %s44 = sadd.s32 0, 0
    %s45 = sadd.s32 0, 0
    %v46 = vld [vmem:[#allocation3] sm:$0xff]
    %v47 = vld [vmem:[#allocation3 + $0x8] sm:$0xff]
    %v48 = vld [vmem:[#allocation6] sm:$0xff]
    %v49 = vld [vmem:[#allocation6 + $0x8] sm:$0xff]
    %v50 = vadd.f32 %v48, 1.0
    %v51 = vadd.f32 %v49, 1.0
    %v52 = vmul.f32 %v46, %v46
    %v53 = vmul.f32 %v47, %v47
    %v54 = vsub.f32 %v50, %v52
    %v55 = vsub.f32 %v51, %v53
    %v56 = vmul.f32 %v48, 1.442695
    %v57 = vpow.pop %v56
    %v58 = vmul.f32 %v49, 1.442695
    %v59 = vpow.pop %v58
    %v60 = vsub.f32 %v54, %v57
    %v61 = vsub.f32 %v55, %v59
    %v62 = vadd.f32 %v60, %v61
    %63 = vadd.xlane.f32.xlu0 %v62
    %v64 = vpop.xlane.xlu0 %63
    %v65 = vrot.slane %v64, 4
    %v66 = vadd.f32 %v64, %v65
    %v67 = vrot.slane %v66, 2
    %v68 = vadd.f32 %v66, %v67
    %v69 = vrot.slane %v68, 1
    %v70 = vadd.f32 %v68, %v69
    %s71 = vtos %v70
    %s72 = smul.f32 %s71, -0.00024414063
    %v73 = vstv %s72
    %74 = vst [vmem:[#allocation8] sm:$0xff] %v73
    // Predicated region
    $region18: #{tpu_custom_call.1} parent=1 // pred_check
      _
    $region19: #{tpu_custom_call.1} parent=1 // pred_check_branch
      %76 = sbr.rel (0) target = $region21
    $region20: #{tpu_custom_call.1} parent=1 // pred_region
      %s78 = ssub.s32 128, 128
      %79 = vsyncadd [#allocation5], %s78
      %s81 = sshll.u32 [#allocation8], 4
      %s82 = int_to_ptr.vmem [resolvable:$true] %s81
      %84 = dma.vmem_to_hbm [thread:$0]  %s82, 128, %s2, [#allocation5]
    $region21: #{tpu_custom_call.1} parent=1 // pred_fallthru
      _
    // Predicated region
    $region22: #{tpu_custom_call.1} parent=1 // pred_check
      _
    $region23: #{tpu_custom_call.1} parent=1 // pred_check_branch
      %86 = sbr.rel (0) target = $region25
    $region24: #{tpu_custom_call.1} parent=1 // pred_region
      %87 = dma.done [#allocation5], 128
    $region25: #{tpu_custom_call.1} parent=1 // pred_fallthru
      _
    %88 = vsyncpa [#allocation4], 1
    %89 = vsyncpa [#allocation7], 1
    %90 = vsyncpa [#allocation5], 1

</llo_original>
